<compile_context>
chip_gen: v6e
topology: v6e:2x2x1
jax: 0.10.0
libtpu: 0.0.40
codegen_flags: <defaults>
</compile_context>

<pallas_src>
import functools

import jax
import jax.numpy as jnp
from jax.experimental import pallas as pl
from jax.experimental.pallas import tpu as pltpu

NEG_SLOPE = 0.01   # nn.LeakyReLU default negative_slope
BN_EPS = 1e-5      # nn.BatchNorm1d default eps
LANE = 128         # lane width (HBM-stored output dim padding)
K_ALIGN = 16       # bf16 sublane pack (contraction / hidden dim padding)
TB_ALIGN = 16      # batch-tile row alignment (bf16 x tile)


def _round_up(x, m):
    return (x + m - 1) // m * m


def _pad2(a, rows, cols):
    return jnp.pad(a, ((0, rows - a.shape[0]), (0, cols - a.shape[1])))


def _default_tile_b():
    # 256-row tiles fill v6e/v7x's 2x256x256 MXU; 128 is native on v5e/v4.
    try:
        kind = jax.devices()[0].device_kind.lower()
    except Exception:
        kind = ""
    return 128 if any(v in kind for v in ("v2", "v3", "v4", "v5")) else 256


def _vmem_capacity_bytes():
    try:
        return int(pltpu.get_tpu_info().vmem_capacity_bytes)
    except Exception:
        return 64 * 1024 * 1024   # v7x per-TensorCore VMEM (smallest current gen)


# ----------------------------------------------------------------------------
# Fused kernel: all hidden blocks + final linear for one batch tile.
# refs = [x, w0, (ws), bias, (scale), wf, bf, out]
#   x     : (tb, din_p)        bf16
#   w0    : (din_p, d_p)       bf16   layer-0 weight (BN scale folded if legal)
#   ws    : (L-1, d_p, d_p)    bf16   stacked hidden weights (only if L > 1)
#   bias  : (L, d_p)           f32    biases with previous-layer BN shift folded in
#   scale : (L, d_p)           f32    BN scales (only when not folded into W)
#   wf    : (d_p, dt_p)        bf16   final weight
#   bf    : (1, dt_p)          f32    final bias (+ last BN shift folded in)
# ----------------------------------------------------------------------------
def _fused_mlp_kernel(*refs, n_hidden, fold_scale):
    it = iter(refs)
    x_ref = next(it)
    w0_ref = next(it)
    ws_ref = next(it) if n_hidden > 1 else None
    b_ref = next(it)
    s_ref = None if fold_scale else next(it)
    wf_ref = next(it)
    bf_ref = next(it)
    o_ref = next(it)

    h = x_ref[...]                                            # bf16 (tb, din_p)
    for l in range(n_hidden):                                 # statically unrolled
        w = w0_ref[...] if l == 0 else ws_ref[l - 1]
        z = jnp.dot(h, w, preferred_element_type=jnp.float32)  # MXU, f32 accum
        z = z + b_ref[l:l + 1, :]                             # bias (shift/scale pre-folded)
        y = jnp.maximum(z, NEG_SLOPE * z)                     # LeakyReLU: mul + max (VPU, f32)
        if not fold_scale:
            y = y * s_ref[l:l + 1, :]                         # BN scale (generic path)
        h = y.astype(jnp.bfloat16)                            # bf16 inter-layer carry
    out = jnp.dot(h, wf_ref[...], preferred_element_type=jnp.float32) + bf_ref[...]
    o_ref[...] = out                                          # lane-dense f32 store


# ----------------------------------------------------------------------------
# Parameter construction / packing
# ----------------------------------------------------------------------------
def init_fc_params(key, d_graph_layer, d_FC_layer, n_FC_layer, n_tasks):
    """Deterministic synthetic params matching the FC ModuleList structure
    (n_FC_layer hidden [Linear+LeakyReLU+BN] blocks, then a final Linear)."""
    hidden = []
    dims = [(d_graph_layer, d_FC_layer)] + [(d_FC_layer, d_FC_layer)] * (n_FC_layer - 1)
    for (din, dout) in dims:
        key, k1, k2, k3, k4, k5, k6 = jax.random.split(key, 7)
        w = jax.random.normal(k1, (din, dout), jnp.float32) / jnp.sqrt(din)
        b = 0.1 * jax.random.normal(k2, (dout,), jnp.float32)
        gamma = 1.0 + 0.1 * jax.random.normal(k3, (dout,), jnp.float32)
        beta = 0.1 * jax.random.normal(k4, (dout,), jnp.float32)
        running_mean = 0.1 * jax.random.normal(k5, (dout,), jnp.float32)
        running_var = jnp.abs(1.0 + 0.1 * jax.random.normal(k6, (dout,), jnp.float32))
        scale = gamma / jnp.sqrt(running_var + BN_EPS)   # BN eval-mode fold
        shift = beta - running_mean * scale
        hidden.append(dict(w=w, b=b, scale=scale, shift=shift))
    key, k1, k2 = jax.random.split(key, 3)
    w_out = jax.random.normal(k1, (d_FC_layer, n_tasks), jnp.float32) / jnp.sqrt(d_FC_layer)
    b_out = 0.1 * jax.random.normal(k2, (n_tasks,), jnp.float32)
    final = dict(w=w_out, b=b_out)
    return hidden, final


def pack_fc_params(hidden_params, final_params):
    """Fold BN into weights/biases, fold shifts forward, pad minimally, cast
    matmul weights to bf16, stack per-layer arrays."""
    L = len(hidden_params)
    try:
        fold = all(bool(jnp.all(p["scale"] >= 0.0)) for p in hidden_params)
    except jax.errors.ConcretizationTypeError:
        fold = False   # under jit/trace: use the generic (always-correct) path

    # Effective weights / biases in f32 (BN scale folded when legal).
    w_eff, b_eff, scales, shifts = [], [], [], []
    for p in hidden_params:
        w, b, s, t = p["w"], p["b"], p["scale"], p["shift"]
        if fold:
            w_eff.append(w * s[None, :])
            b_eff.append(b * s)
        else:
            w_eff.append(w)
            b_eff.append(b)
        scales.append(s)
        shifts.append(t)

    # Fold each layer's additive BN shift forward into the next bias (f32, exact).
    for l in range(1, L):
        b_eff[l] = b_eff[l] + shifts[l - 1] @ w_eff[l]
    wf = final_params["w"].astype(jnp.float32)
    bf = final_params["b"].astype(jnp.float32) + shifts[L - 1] @ wf

    din, d_fc = w_eff[0].shape
    din_p = _round_up(din, K_ALIGN)       # contraction dims: bf16 pack only
    d_p = _round_up(d_fc, K_ALIGN)
    n_tasks = wf.shape[1]
    dt_p = _round_up(n_tasks, LANE)       # lane-dense HBM store of the result

    w0 = _pad2(w_eff[0], din_p, d_p).astype(jnp.bfloat16)
    ws = (jnp.stack([_pad2(w, d_p, d_p) for w in w_eff[1:]]).astype(jnp.bfloat16)
          if L > 1 else None)
    bias = jnp.stack([jnp.pad(b, (0, d_p - d_fc)) for b in b_eff]).astype(jnp.float32)
    scale = (None if fold else
             jnp.stack([jnp.pad(s, (0, d_p - d_fc)) for s in scales]).astype(jnp.float32))
    wf_p = _pad2(wf, d_p, dt_p).astype(jnp.bfloat16)
    bf_p = jnp.pad(bf, (0, dt_p - n_tasks)).reshape(1, -1).astype(jnp.float32)

    return dict(w0=w0, ws=ws, bias=bias, scale=scale, wf=wf_p, bf=bf_p,
                fold=fold, n_hidden=L, n_tasks=n_tasks)


# ----------------------------------------------------------------------------
# Forward wrapper: one fused pallas_call over a batch grid.
# ----------------------------------------------------------------------------
def fc_forward(x, packed, *, tile_b=None):
    B, _ = x.shape
    L = packed["n_hidden"]
    w0, ws, bias, scale = packed["w0"], packed["ws"], packed["bias"], packed["scale"]
    wf, bf = packed["wf"], packed["bf"]
    din_p, d_p = w0.shape
    dt_p = wf.shape[1]

    if tile_b is None:
        tile_b = _default_tile_b()

    resident = [w0] + ([ws] if ws is not None else []) + [bias] \
               + ([scale] if scale is not None else []) + [wf, bf]
    resident_bytes = sum(a.size * a.dtype.itemsize for a in resident)

    # Batch tile: 16-row aligned (bf16 pack). Expose >=2 grid steps when the
    # batch allows it so ("parallel",) can shard across v7x's 2 TensorCores.
    b_min = _round_up(max(B, 1), TB_ALIGN)
    tb = min(_round_up(tile_b, TB_ALIGN),
             max(TB_ALIGN, _round_up(pl.cdiv(b_min, 2), TB_ALIGN)))

    vmem_cap = _vmem_capacity_bytes()

    def footprint(tb_):
        stream = 2 * tb_ * din_p * 2            # x tile, bf16, double-buffered
        stream += 2 * tb_ * dt_p * 4            # out tile, f32, double-buffered
        act = tb_ * max(din_p, d_p, dt_p) * 4 * 3   # f32 matmul result + carries headroom
        return resident_bytes + stream + act

    while tb > TB_ALIGN and footprint(tb) > int(0.8 * vmem_cap):
        tb = max(TB_ALIGN, _round_up(tb // 2, TB_ALIGN))
    assert footprint(tb) <= int(0.9 * vmem_cap), (
        "FC weights/activations do not fit VMEM even at the minimum batch tile")
    # TODO(synk): tile the weight K/N dims for d_FC sizes whose resident weights
    # alone exceed the per-core VMEM budget.

    vmem_limit = int(min(vmem_cap, max(2 * footprint(tb), 32 * 1024 * 1024)))

    b_pad = _round_up(B, tb)
    x_pad = _pad2(x, b_pad, din_p).astype(jnp.bfloat16)   # pad + cast ONCE

    kernel = functools.partial(_fused_mlp_kernel,
                               n_hidden=L, fold_scale=packed["fold"])

    def call(single_buffer_weights):
        def res_spec(arr):
            nd = arr.ndim
            kw = {"pipeline_mode": pl.Buffered(1)} if single_buffer_weights else {}
            return pl.BlockSpec(arr.shape, lambda i, _nd=nd: (0,) * _nd, **kw)

        in_specs = [pl.BlockSpec((tb, din_p), lambda i: (i, 0))]
        in_specs += [res_spec(a) for a in resident]
        return pl.pallas_call(
            kernel,
            out_shape=jax.ShapeDtypeStruct((b_pad, dt_p), jnp.float32),
            grid=(b_pad // tb,),
            in_specs=in_specs,
            out_specs=pl.BlockSpec((tb, dt_p), lambda i: (i, 0)),
            compiler_params=pltpu.CompilerParams(
                dimension_semantics=("parallel",),
                vmem_limit_bytes=vmem_limit),
        )(x_pad, *resident)

    try:
        out_pad = call(True)    # resident weights fetched once, single-buffered
    except Exception:
        out_pad = call(False)   # fallback: default double-buffering
    return out_pad[:B, :packed["n_tasks"]]


# ----------------------------------------------------------------------------
# Pure-JAX references
# ----------------------------------------------------------------------------
def fc_reference_packed(x, packed):
    """Matches the kernel math exactly (same padding, bf16 matmul inputs)."""
    din_p = packed["w0"].shape[0]
    h = jnp.pad(x, ((0, 0), (0, din_p - x.shape[1]))).astype(jnp.bfloat16)
    for l in range(packed["n_hidden"]):
        w = packed["w0"] if l == 0 else packed["ws"][l - 1]
        z = jnp.dot(h, w, preferred_element_type=jnp.float32) + packed["bias"][l:l + 1, :]
        y = jnp.maximum(z, NEG_SLOPE * z)
        if not packed["fold"]:
            y = y * packed["scale"][l:l + 1, :]
        h = y.astype(jnp.bfloat16)
    out = jnp.dot(h, packed["wf"], preferred_element_type=jnp.float32) + packed["bf"]
    return out[:, :packed["n_tasks"]]


def fc_reference_f32(x, hidden_params, final_params):
    """Full-precision reference of the original module semantics (eval mode)."""
    h = x
    for p in hidden_params:
        y = h @ p["w"] + p["b"]
        y = jnp.where(y >= 0, y, NEG_SLOPE * y)
        h = y * p["scale"] + p["shift"]
    return h @ final_params["w"] + final_params["b"]


if __name__ == "__main__":
    d_graph_layer, d_FC_layer, n_FC_layer, n_tasks = 32, 32, 3, 1
    batch = 8

    key = jax.random.PRNGKey(0)
    kx, kp = jax.random.split(key)
    h = jax.random.normal(kx, (batch, d_graph_layer), jnp.float32)
    hidden_params, final_params = init_fc_params(
        kp, d_graph_layer, d_FC_layer, n_FC_layer, n_tasks)
    packed = pack_fc_params(hidden_params, final_params)

    out = fc_forward(h, packed)
    out = jax.block_until_ready(out)
    assert out.shape == (batch, n_tasks), out.shape

    # Tight check vs. a pure-JAX reference using the identical (bf16) math.
    ref_exact = fc_reference_packed(h, packed)
    assert jnp.allclose(out, ref_exact, atol=1e-3, rtol=1e-3), "mismatch vs matched reference"

    # Loose sanity check vs. full-f32 original-module semantics (difference is
    # only bf16 rounding of matmul inputs / folded weights).
    ref_f32 = fc_reference_f32(h, hidden_params, final_params)
    assert jnp.allclose(out, ref_f32, atol=0.25, rtol=0.25), "gross mismatch vs f32 reference"

    print("KERNEL_OK")
</pallas_src>

<mosaic_0001>
module attributes {stable_mosaic.version = 11 : i64} {
  func.func @_fused_mlp_kernel(%arg0: i32, %arg1: memref<16x32xbf16, #tpu.memory_space<vmem>>, %arg2: memref<32x32xbf16, #tpu.memory_space<vmem>>, %arg3: memref<2x32x32xbf16, #tpu.memory_space<vmem>>, %arg4: memref<3x32xf32, #tpu.memory_space<vmem>>, %arg5: memref<32x128xbf16, #tpu.memory_space<vmem>>, %arg6: memref<1x128xf32, #tpu.memory_space<vmem>>, %arg7: memref<16x128xf32, #tpu.memory_space<vmem>>) attributes {dimension_semantics = [#tpu.dimension_semantics<parallel>], iteration_bounds = array<i64: 1>, scalar_prefetch = 0 : i64, scratch_operands = 0 : i64, tpu.core_type = #tpu.core_type<tc>, window_params = [{transform_indices = @transform_0, window_bounds = array<i64: 16, 32>}, {pipeline_mode = #tpu.pipeline_mode<synchronous>, transform_indices = @transform_1, window_bounds = array<i64: 32, 32>}, {pipeline_mode = #tpu.pipeline_mode<synchronous>, transform_indices = @transform_2, window_bounds = array<i64: 2, 32, 32>}, {pipeline_mode = #tpu.pipeline_mode<synchronous>, transform_indices = @transform_3, window_bounds = array<i64: 3, 32>}, {pipeline_mode = #tpu.pipeline_mode<synchronous>, transform_indices = @transform_4, window_bounds = array<i64: 32, 128>}, {pipeline_mode = #tpu.pipeline_mode<synchronous>, transform_indices = @transform_5, window_bounds = array<i64: 1, 128>}, {transform_indices = @transform_6, window_bounds = array<i64: 16, 128>}]} {
    %c0 = arith.constant 0 : index
    %c0_0 = arith.constant 0 : index
    %0 = vector.load %arg1[%c0, %c0_0] : memref<16x32xbf16, #tpu.memory_space<vmem>>, vector<16x32xbf16>
    %c0_1 = arith.constant 0 : index
    %c0_2 = arith.constant 0 : index
    %1 = vector.load %arg2[%c0_1, %c0_2] : memref<32x32xbf16, #tpu.memory_space<vmem>>, vector<32x32xbf16>
    %cst = arith.constant dense<0.000000e+00> : vector<16x32xf32>
    %2 = tpu.matmul %0, %1, %cst {dimension_numbers = #tpu.dot_dimension_numbers<[1], [0], [0], [1], [0, 0, 1, 1], [], []>} : vector<16x32xbf16>, vector<32x32xbf16>, vector<16x32xf32> -> vector<16x32xf32>
    %c0_3 = arith.constant 0 : index
    %c0_4 = arith.constant 0 : index
    %3 = vector.load %arg4[%c0_3, %c0_4] : memref<3x32xf32, #tpu.memory_space<vmem>>, vector<1x32xf32>
    %4 = vector.broadcast %3 : vector<1x32xf32> to vector<16x32xf32>
    %5 = arith.addf %2, %4 : vector<16x32xf32>
    %cst_5 = arith.constant 0.00999999977 : f32
    %6 = vector.broadcast %cst_5 : f32 to vector<16x32xf32>
    %7 = arith.mulf %6, %5 : vector<16x32xf32>
    %8 = arith.maximumf %5, %7 : vector<16x32xf32>
    %9 = arith.truncf %8 : vector<16x32xf32> to vector<16x32xbf16>
    %c0_6 = arith.constant 0 : index
    %c0_7 = arith.constant 0 : index
    %c0_8 = arith.constant 0 : index
    %10 = vector.load %arg3[%c0_6, %c0_7, %c0_8] : memref<2x32x32xbf16, #tpu.memory_space<vmem>>, vector<1x32x32xbf16>
    %11 = vector.shape_cast %10 : vector<1x32x32xbf16> to vector<32x32xbf16>
    %cst_9 = arith.constant dense<0.000000e+00> : vector<16x32xf32>
    %12 = tpu.matmul %9, %11, %cst_9 {dimension_numbers = #tpu.dot_dimension_numbers<[1], [0], [0], [1], [0, 0, 1, 1], [], []>} : vector<16x32xbf16>, vector<32x32xbf16>, vector<16x32xf32> -> vector<16x32xf32>
    %c1 = arith.constant 1 : index
    %c0_10 = arith.constant 0 : index
    %13 = vector.load %arg4[%c1, %c0_10] : memref<3x32xf32, #tpu.memory_space<vmem>>, vector<1x32xf32>
    %14 = vector.broadcast %13 : vector<1x32xf32> to vector<16x32xf32>
    %15 = arith.addf %12, %14 : vector<16x32xf32>
    %cst_11 = arith.constant 0.00999999977 : f32
    %16 = vector.broadcast %cst_11 : f32 to vector<16x32xf32>
    %17 = arith.mulf %16, %15 : vector<16x32xf32>
    %18 = arith.maximumf %15, %17 : vector<16x32xf32>
    %19 = arith.truncf %18 : vector<16x32xf32> to vector<16x32xbf16>
    %c1_12 = arith.constant 1 : index
    %c0_13 = arith.constant 0 : index
    %c0_14 = arith.constant 0 : index
    %20 = vector.load %arg3[%c1_12, %c0_13, %c0_14] : memref<2x32x32xbf16, #tpu.memory_space<vmem>>, vector<1x32x32xbf16>
    %21 = vector.shape_cast %20 : vector<1x32x32xbf16> to vector<32x32xbf16>
    %cst_15 = arith.constant dense<0.000000e+00> : vector<16x32xf32>
    %22 = tpu.matmul %19, %21, %cst_15 {dimension_numbers = #tpu.dot_dimension_numbers<[1], [0], [0], [1], [0, 0, 1, 1], [], []>} : vector<16x32xbf16>, vector<32x32xbf16>, vector<16x32xf32> -> vector<16x32xf32>
    %c2 = arith.constant 2 : index
    %c0_16 = arith.constant 0 : index
    %23 = vector.load %arg4[%c2, %c0_16] : memref<3x32xf32, #tpu.memory_space<vmem>>, vector<1x32xf32>
    %24 = vector.broadcast %23 : vector<1x32xf32> to vector<16x32xf32>
    %25 = arith.addf %22, %24 : vector<16x32xf32>
    %cst_17 = arith.constant 0.00999999977 : f32
    %26 = vector.broadcast %cst_17 : f32 to vector<16x32xf32>
    %27 = arith.mulf %26, %25 : vector<16x32xf32>
    %28 = arith.maximumf %25, %27 : vector<16x32xf32>
    %29 = arith.truncf %28 : vector<16x32xf32> to vector<16x32xbf16>
    %c0_18 = arith.constant 0 : index
    %c0_19 = arith.constant 0 : index
    %30 = vector.load %arg5[%c0_18, %c0_19] : memref<32x128xbf16, #tpu.memory_space<vmem>>, vector<32x128xbf16>
    %cst_20 = arith.constant dense<0.000000e+00> : vector<16x128xf32>
    %31 = tpu.matmul %29, %30, %cst_20 {dimension_numbers = #tpu.dot_dimension_numbers<[1], [0], [0], [1], [0, 0, 1, 1], [], []>} : vector<16x32xbf16>, vector<32x128xbf16>, vector<16x128xf32> -> vector<16x128xf32>
    %c0_21 = arith.constant 0 : index
    %c0_22 = arith.constant 0 : index
    %32 = vector.load %arg6[%c0_21, %c0_22] : memref<1x128xf32, #tpu.memory_space<vmem>>, vector<1x128xf32>
    %33 = vector.broadcast %32 : vector<1x128xf32> to vector<16x128xf32>
    %34 = arith.addf %31, %33 : vector<16x128xf32>
    %c0_23 = arith.constant 0 : index
    %c0_24 = arith.constant 0 : index
    %35 = vector.load %arg7[%c0_23, %c0_24] : memref<16x128xf32, #tpu.memory_space<vmem>>, vector<16x128xf32>
    tpu.vector_store %arg7[%c0_23, %c0_24], %34 {strides = array<i32>} : memref<16x128xf32, #tpu.memory_space<vmem>>, vector<16x128xf32>,
    return
  }
  func.func @transform_0(%arg0: i32) -> (i32, i32) {
    %c0_i32 = arith.constant 0 : i32
    %c0_i32_0 = arith.constant 0 : i32
    return %arg0, %c0_i32 : i32, i32
  }
  func.func @transform_1(%arg0: i32) -> (i32, i32) {
    %c0_i32 = arith.constant 0 : i32
    %c0_i32_0 = arith.constant 0 : i32
    %c0_i32_1 = arith.constant 0 : i32
    return %c0_i32, %c0_i32_0 : i32, i32
  }
  func.func @transform_2(%arg0: i32) -> (i32, i32, i32) {
    %c0_i32 = arith.constant 0 : i32
    %c0_i32_0 = arith.constant 0 : i32
    %c0_i32_1 = arith.constant 0 : i32
    %c0_i32_2 = arith.constant 0 : i32
    return %c0_i32, %c0_i32_0, %c0_i32_1 : i32, i32, i32
  }
  func.func @transform_3(%arg0: i32) -> (i32, i32) {
    %c0_i32 = arith.constant 0 : i32
    %c0_i32_0 = arith.constant 0 : i32
    %c0_i32_1 = arith.constant 0 : i32
    return %c0_i32, %c0_i32_0 : i32, i32
  }
  func.func @transform_4(%arg0: i32) -> (i32, i32) {
    %c0_i32 = arith.constant 0 : i32
    %c0_i32_0 = arith.constant 0 : i32
    %c0_i32_1 = arith.constant 0 : i32
    return %c0_i32, %c0_i32_0 : i32, i32
  }
  func.func @transform_5(%arg0: i32) -> (i32, i32) {
    %c0_i32 = arith.constant 0 : i32
    %c0_i32_0 = arith.constant 0 : i32
    %c0_i32_1 = arith.constant 0 : i32
    return %c0_i32, %c0_i32_0 : i32, i32
  }
  func.func @transform_6(%arg0: i32) -> (i32, i32) {
    %c0_i32 = arith.constant 0 : i32
    %c0_i32_0 = arith.constant 0 : i32
    return %arg0, %c0_i32 : i32, i32
  }
}

module attributes {stable_mosaic.version = 11 : i64} {
  func.func @_fused_mlp_kernel(%arg0: i32, %arg1: memref<16x32xbf16, #tpu.memory_space<vmem>>, %arg2: memref<32x32xbf16, #tpu.memory_space<vmem>>, %arg3: memref<2x32x32xbf16, #tpu.memory_space<vmem>>, %arg4: memref<3x32xf32, #tpu.memory_space<vmem>>, %arg5: memref<32x128xbf16, #tpu.memory_space<vmem>>, %arg6: memref<1x128xf32, #tpu.memory_space<vmem>>, %arg7: memref<16x128xf32, #tpu.memory_space<vmem>>) attributes {dimension_semantics = [#tpu.dimension_semantics<parallel>], iteration_bounds = array<i64: 1>, scalar_prefetch = 0 : i64, scratch_operands = 0 : i64, tpu.core_type = #tpu.core_type<tc>, window_params = [{transform_indices = @transform_0, window_bounds = array<i64: 16, 32>}, {pipeline_mode = #tpu.pipeline_mode<synchronous>, transform_indices = @transform_1, window_bounds = array<i64: 32, 32>}, {pipeline_mode = #tpu.pipeline_mode<synchronous>, transform_indices = @transform_2, window_bounds = array<i64: 2, 32, 32>}, {pipeline_mode = #tpu.pipeline_mode<synchronous>, transform_indices = @transform_3, window_bounds = array<i64: 3, 32>}, {pipeline_mode = #tpu.pipeline_mode<synchronous>, transform_indices = @transform_4, window_bounds = array<i64: 32, 128>}, {pipeline_mode = #tpu.pipeline_mode<synchronous>, transform_indices = @transform_5, window_bounds = array<i64: 1, 128>}, {transform_indices = @transform_6, window_bounds = array<i64: 16, 128>}]} {
    %c0 = arith.constant 0 : index
    %c0_0 = arith.constant 0 : index
    %0 = vector.load %arg1[%c0, %c0_0] : memref<16x32xbf16, #tpu.memory_space<vmem>>, vector<16x32xbf16>
    %c0_1 = arith.constant 0 : index
    %c0_2 = arith.constant 0 : index
    %1 = vector.load %arg2[%c0_1, %c0_2] : memref<32x32xbf16, #tpu.memory_space<vmem>>, vector<32x32xbf16>
    %cst = arith.constant dense<0.000000e+00> : vector<16x32xf32>
    %2 = tpu.matmul %0, %1, %cst {dimension_numbers = #tpu.dot_dimension_numbers<[1], [0], [0], [1], [0, 0, 1, 1], [], []>} : vector<16x32xbf16>, vector<32x32xbf16>, vector<16x32xf32> -> vector<16x32xf32>
    %c0_3 = arith.constant 0 : index
    %c0_4 = arith.constant 0 : index
    %3 = vector.load %arg4[%c0_3, %c0_4] : memref<3x32xf32, #tpu.memory_space<vmem>>, vector<1x32xf32>
    %4 = vector.broadcast %3 : vector<1x32xf32> to vector<16x32xf32>
    %5 = arith.addf %2, %4 : vector<16x32xf32>
    %cst_5 = arith.constant 0.00999999977 : f32
    %6 = vector.broadcast %cst_5 : f32 to vector<16x32xf32>
    %7 = arith.mulf %6, %5 : vector<16x32xf32>
    %8 = arith.maximumf %5, %7 : vector<16x32xf32>
    %9 = arith.truncf %8 : vector<16x32xf32> to vector<16x32xbf16>
    %c0_6 = arith.constant 0 : index
    %c0_7 = arith.constant 0 : index
    %c0_8 = arith.constant 0 : index
    %10 = vector.load %arg3[%c0_6, %c0_7, %c0_8] : memref<2x32x32xbf16, #tpu.memory_space<vmem>>, vector<1x32x32xbf16>
    %11 = vector.shape_cast %10 : vector<1x32x32xbf16> to vector<32x32xbf16>
    %cst_9 = arith.constant dense<0.000000e+00> : vector<16x32xf32>
    %12 = tpu.matmul %9, %11, %cst_9 {dimension_numbers = #tpu.dot_dimension_numbers<[1], [0], [0], [1], [0, 0, 1, 1], [], []>} : vector<16x32xbf16>, vector<32x32xbf16>, vector<16x32xf32> -> vector<16x32xf32>
    %c1 = arith.constant 1 : index
    %c0_10 = arith.constant 0 : index
    %13 = vector.load %arg4[%c1, %c0_10] : memref<3x32xf32, #tpu.memory_space<vmem>>, vector<1x32xf32>
    %14 = vector.broadcast %13 : vector<1x32xf32> to vector<16x32xf32>
    %15 = arith.addf %12, %14 : vector<16x32xf32>
    %cst_11 = arith.constant 0.00999999977 : f32
    %16 = vector.broadcast %cst_11 : f32 to vector<16x32xf32>
    %17 = arith.mulf %16, %15 : vector<16x32xf32>
    %18 = arith.maximumf %15, %17 : vector<16x32xf32>
    %19 = arith.truncf %18 : vector<16x32xf32> to vector<16x32xbf16>
    %c1_12 = arith.constant 1 : index
    %c0_13 = arith.constant 0 : index
    %c0_14 = arith.constant 0 : index
    %20 = vector.load %arg3[%c1_12, %c0_13, %c0_14] : memref<2x32x32xbf16, #tpu.memory_space<vmem>>, vector<1x32x32xbf16>
    %21 = vector.shape_cast %20 : vector<1x32x32xbf16> to vector<32x32xbf16>
    %cst_15 = arith.constant dense<0.000000e+00> : vector<16x32xf32>
    %22 = tpu.matmul %19, %21, %cst_15 {dimension_numbers = #tpu.dot_dimension_numbers<[1], [0], [0], [1], [0, 0, 1, 1], [], []>} : vector<16x32xbf16>, vector<32x32xbf16>, vector<16x32xf32> -> vector<16x32xf32>
    %c2 = arith.constant 2 : index
    %c0_16 = arith.constant 0 : index
    %23 = vector.load %arg4[%c2, %c0_16] : memref<3x32xf32, #tpu.memory_space<vmem>>, vector<1x32xf32>
    %24 = vector.broadcast %23 : vector<1x32xf32> to vector<16x32xf32>
    %25 = arith.addf %22, %24 : vector<16x32xf32>
    %cst_17 = arith.constant 0.00999999977 : f32
    %26 = vector.broadcast %cst_17 : f32 to vector<16x32xf32>
    %27 = arith.mulf %26, %25 : vector<16x32xf32>
    %28 = arith.maximumf %25, %27 : vector<16x32xf32>
    %29 = arith.truncf %28 : vector<16x32xf32> to vector<16x32xbf16>
    %c0_18 = arith.constant 0 : index
    %c0_19 = arith.constant 0 : index
    %30 = vector.load %arg5[%c0_18, %c0_19] : memref<32x128xbf16, #tpu.memory_space<vmem>>, vector<32x128xbf16>
    %cst_20 = arith.constant dense<0.000000e+00> : vector<16x128xf32>
    %31 = tpu.matmul %29, %30, %cst_20 {dimension_numbers = #tpu.dot_dimension_numbers<[1], [0], [0], [1], [0, 0, 1, 1], [], []>} : vector<16x32xbf16>, vector<32x128xbf16>, vector<16x128xf32> -> vector<16x128xf32>
    %c0_21 = arith.constant 0 : index
    %c0_22 = arith.constant 0 : index
    %32 = vector.load %arg6[%c0_21, %c0_22] : memref<1x128xf32, #tpu.memory_space<vmem>>, vector<1x128xf32>
    %33 = vector.broadcast %32 : vector<1x128xf32> to vector<16x128xf32>
    %34 = arith.addf %31, %33 : vector<16x128xf32>
    %c0_23 = arith.constant 0 : index
    %c0_24 = arith.constant 0 : index
    %35 = vector.load %arg7[%c0_23, %c0_24] : memref<16x128xf32, #tpu.memory_space<vmem>>, vector<16x128xf32>
    tpu.vector_store %arg7[%c0_23, %c0_24], %34 {strides = array<i32>} : memref<16x128xf32, #tpu.memory_space<vmem>>, vector<16x128xf32>,
    return
  }
  func.func @transform_0(%arg0: i32) -> (i32, i32) {
    %c0_i32 = arith.constant 0 : i32
    %c0_i32_0 = arith.constant 0 : i32
    return %arg0, %c0_i32 : i32, i32
  }
  func.func @transform_1(%arg0: i32) -> (i32, i32) {
    %c0_i32 = arith.constant 0 : i32
    %c0_i32_0 = arith.constant 0 : i32
    %c0_i32_1 = arith.constant 0 : i32
    return %c0_i32, %c0_i32_0 : i32, i32
  }
  func.func @transform_2(%arg0: i32) -> (i32, i32, i32) {
    %c0_i32 = arith.constant 0 : i32
    %c0_i32_0 = arith.constant 0 : i32
    %c0_i32_1 = arith.constant 0 : i32
    %c0_i32_2 = arith.constant 0 : i32
    return %c0_i32, %c0_i32_0, %c0_i32_1 : i32, i32, i32
  }
  func.func @transform_3(%arg0: i32) -> (i32, i32) {
    %c0_i32 = arith.constant 0 : i32
    %c0_i32_0 = arith.constant 0 : i32
    %c0_i32_1 = arith.constant 0 : i32
    return %c0_i32, %c0_i32_0 : i32, i32
  }
  func.func @transform_4(%arg0: i32) -> (i32, i32) {
    %c0_i32 = arith.constant 0 : i32
    %c0_i32_0 = arith.constant 0 : i32
    %c0_i32_1 = arith.constant 0 : i32
    return %c0_i32, %c0_i32_0 : i32, i32
  }
  func.func @transform_5(%arg0: i32) -> (i32, i32) {
    %c0_i32 = arith.constant 0 : i32
    %c0_i32_0 = arith.constant 0 : i32
    %c0_i32_1 = arith.constant 0 : i32
    return %c0_i32, %c0_i32_0 : i32, i32
  }
  func.func @transform_6(%arg0: i32) -> (i32, i32) {
    %c0_i32 = arith.constant 0 : i32
    %c0_i32_0 = arith.constant 0 : i32
    return %arg0, %c0_i32 : i32, i32
  }
}

</mosaic_0001>

<llo_original>
// kernel: tpu_custom_call.1
$region0: #{tpu_custom_call.1}
  #allocation0 [shape = 'u32[]', space=smem, size = 0x4, offset = 0x4, fixed_abs, tag = 'smem constant byte address 0x4 - core index']
  #allocation1 [shape = 'u32[144,128]{1,0:T(1,128)}', space=vmem, size = 0x12000, scoped, tag = 'internal scratch']
  %s0 = inlined_call_operand.hbm [shape: bf16[16,32], index: 0, kind: input, shape index: {}]
  %s1 = inlined_call_operand.hbm [shape: bf16[32,32], index: 1, kind: input, shape index: {}]
  %s2 = inlined_call_operand.hbm [shape: bf16[2,32,32], index: 2, kind: input, shape index: {}]
  %s3 = inlined_call_operand.vmem [shape: f32[3,32], index: 3, kind: input, shape index: {}]
  %s4 = inlined_call_operand.hbm [shape: bf16[32,128], index: 4, kind: input, shape index: {}]
  %s5 = inlined_call_operand.vmem [shape: f32[1,128], index: 5, kind: input, shape index: {}]
  %s6 = inlined_call_operand.hbm [shape: f32[16,128], index: 6, kind: output, shape index: {}]
  %s7 = sld [smem:[#allocation0]]
  $region50: #{tpu_custom_call.1} parent=0
    _
  %s9 = ssub.s32 1, %s7
  %s10 = scalar_select 0, %s9, %s7
  $region1: #{tpu_custom_call.1} parent=0
    #allocation2 [shape = 'u8[4096]{0}', space=vmem, size = 0x1000, scoped, tag = 'input window, operand 0, single buffered']
    #allocation3 [shape = 's32[1]{0}', space=sflag, size = 0x4, scoped, tag = 'scoped memory for tpu_custom_call.1']
    #allocation4 [shape = 's32[1]{0}', space=sflag, size = 0x4, scoped, tag = 'scoped memory for tpu_custom_call.1']
    #allocation5 [shape = 'u8[8192]{0}', space=vmem, size = 0x2000, scoped, tag = 'input window, operand 1, single buffered']
    #allocation6 [shape = 's32[1]{0}', space=sflag, size = 0x4, scoped, tag = 'scoped memory for tpu_custom_call.1']
    #allocation7 [shape = 'u8[16384]{0}', space=vmem, size = 0x4000, scoped, tag = 'input window, operand 2, single buffered']
    #allocation8 [shape = 'u8[8192]{0}', space=vmem, size = 0x2000, scoped, tag = 'input window, operand 4, single buffered']
    #allocation9 [shape = 's32[1]{0}', space=sflag, size = 0x4, scoped, tag = 'scoped memory for tpu_custom_call.1']
    #allocation10 [shape = 'u8[8192]{0}', space=vmem, size = 0x2000, scoped, tag = 'output window, operand 0, single buffered']
    %11 = vsyncpa [#allocation3], 0
    %12 = vsyncpa [#allocation6], 0
    %13 = vsyncpa [#allocation9], 0
    %14 = vsyncpa [#allocation4], 0
    // Predicated region
    $region2: #{tpu_custom_call.1} parent=1 // pred_check
      _
    $region3: #{tpu_custom_call.1} parent=1 // pred_check_branch
      %16 = sbr.rel (0) target = $region5
    $region4: #{tpu_custom_call.1} parent=1 // pred_region
      %s18 = ssub.s32 128, 128
      %19 = vsyncadd [#allocation3], %s18
      %s20 = sshll.u32 [#allocation2], 4
      %s21 = int_to_ptr.vmem [resolvable:$true] %s20
      %26 = dma.hbm_to_vmem [thread:$0]  %s0, 128, %s21, [#allocation3], 64, 64, 4
    $region5: #{tpu_custom_call.1} parent=1 // pred_fallthru
      _
    // Predicated region
    $region6: #{tpu_custom_call.1} parent=1 // pred_check
      _
    $region7: #{tpu_custom_call.1} parent=1 // pred_check_branch
      %28 = sbr.rel (0) target = $region9
    $region8: #{tpu_custom_call.1} parent=1 // pred_region
      %s30 = ssub.s32 256, 256
      %31 = vsyncadd [#allocation6], %s30
      %s32 = sshll.u32 [#allocation5], 4
      %s33 = int_to_ptr.vmem [resolvable:$true] %s32
      %38 = dma.hbm_to_vmem [thread:$0]  %s1, 256, %s33, [#allocation6], 64, 64, 4
    $region9: #{tpu_custom_call.1} parent=1 // pred_fallthru
      _
    // Predicated region
    $region10: #{tpu_custom_call.1} parent=1 // pred_check
      _
    $region11: #{tpu_custom_call.1} parent=1 // pred_check_branch
      %40 = sbr.rel (0) target = $region13
    $region12: #{tpu_custom_call.1} parent=1 // pred_region
      %s42 = ssub.s32 512, 512
      %43 = vsyncadd [#allocation6], %s42
      %s44 = sshll.u32 [#allocation7], 4
      %s45 = int_to_ptr.vmem [resolvable:$true] %s44
      %50 = dma.hbm_to_vmem [thread:$0]  %s2, 512, %s45, [#allocation6], 64, 64, 4
    $region13: #{tpu_custom_call.1} parent=1 // pred_fallthru
      _
    // Predicated region
    $region14: #{tpu_custom_call.1} parent=1 // pred_check
      _
    $region15: #{tpu_custom_call.1} parent=1 // pred_check_branch
      %52 = sbr.rel (0) target = $region17
    $region16: #{tpu_custom_call.1} parent=1 // pred_region
      _
    $region17: #{tpu_custom_call.1} parent=1 // pred_fallthru
      _
    // Predicated region
    $region18: #{tpu_custom_call.1} parent=1 // pred_check
      _
    $region19: #{tpu_custom_call.1} parent=1 // pred_check_branch
      %54 = sbr.rel (0) target = $region21
    $region20: #{tpu_custom_call.1} parent=1 // pred_region
      %s56 = ssub.s32 256, 256
      %57 = vsyncadd [#allocation9], %s56
      %s58 = sshll.u32 [#allocation8], 4
      %s59 = int_to_ptr.vmem [resolvable:$true] %s58
      %64 = dma.hbm_to_vmem [thread:$0]  %s4, 256, %s59, [#allocation9], 64, 64, 4
    $region21: #{tpu_custom_call.1} parent=1 // pred_fallthru
      _
    // Predicated region
    $region22: #{tpu_custom_call.1} parent=1 // pred_check
      _
    $region23: #{tpu_custom_call.1} parent=1 // pred_check_branch
      %66 = sbr.rel (0) target = $region25
    $region24: #{tpu_custom_call.1} parent=1 // pred_region
      _
    $region25: #{tpu_custom_call.1} parent=1 // pred_fallthru
      _
    // Predicated region
    $region26: #{tpu_custom_call.1} parent=1 // pred_check
      _
    $region27: #{tpu_custom_call.1} parent=1 // pred_check_branch
      %68 = sbr.rel (0) target = $region29
    $region28: #{tpu_custom_call.1} parent=1 // pred_region
      %69 = dma.done [#allocation3], 128
    $region29: #{tpu_custom_call.1} parent=1 // pred_fallthru
      _
    // Predicated region
    $region30: #{tpu_custom_call.1} parent=1 // pred_check
      _
    $region31: #{tpu_custom_call.1} parent=1 // pred_check_branch
      %71 = sbr.rel (0) target = $region33
    $region32: #{tpu_custom_call.1} parent=1 // pred_region
      %72 = dma.done [#allocation6], 256
    $region33: #{tpu_custom_call.1} parent=1 // pred_fallthru
      _
    // Predicated region
    $region34: #{tpu_custom_call.1} parent=1 // pred_check
      _
    $region35: #{tpu_custom_call.1} parent=1 // pred_check_branch
      %74 = sbr.rel (0) target = $region37
    $region36: #{tpu_custom_call.1} parent=1 // pred_region
      %75 = dma.done [#allocation6], 512
    $region37: #{tpu_custom_call.1} parent=1 // pred_fallthru
      _
    // Predicated region
    $region38: #{tpu_custom_call.1} parent=1 // pred_check
      _
    $region39: #{tpu_custom_call.1} parent=1 // pred_check_branch
      %77 = sbr.rel (0) target = $region41
    $region40: #{tpu_custom_call.1} parent=1 // pred_region
      %78 = dma.done [#allocation9], 256
    $region41: #{tpu_custom_call.1} parent=1 // pred_fallthru
      _
    %v80 = vld [vmem:[#allocation2] sm:$0xf]
    %v81 = vld [vmem:[#allocation2 + $0x4] sm:$0xf]
    %v82 = vld [vmem:[#allocation5] sm:$0xf]
    %v83 = vld [vmem:[#allocation5 + $0x4] sm:$0xf]
    %v84 = vld [vmem:[#allocation5 + $0x8] sm:$0xf]
    %v85 = vld [vmem:[#allocation5 + $0xc] sm:$0xf]
    %v86 = vld [vmem:[%s3] sm:$0x1]
    %v87 = vlaneseq
    %v88 = vshrl.u32 %v87, 7
    %v89 = vsub.s32 0, %v88
    %v90 = vrot.slane %v86, %v89
    %v93 = vunpack.c.l.b16 %v80
    %v94 = vunpack.c.l.b16 %v81
    %v95 = vpack.c.b16 %v94, %v93
    %v100 = vunpack.c.l.b16 %v82
    %v101 = vunpack.c.l.b16 %v83
    %v102 = vunpack.c.l.b16 %v84
    %v103 = vunpack.c.l.b16 %v85
    %v104 = vpack.c.b16 %v101, %v100
    %v105 = vpack.c.b16 %v103, %v102
    %vm108 = vcmask 261120
    %v110 = vsel %vm108, %v95, 0
    %112 = vmatprep.subr.bf16.mxu0 0
    %113 = vmatpush1.bf16.msra.mxu0 0
    %114 = vmatprep.subr.bf16.mxu0 0
    %115 = vmatpush1.bf16.msra.mxu0 0
    %116 = vmatprep.subr.bf16.mxu0 0
    %117 = vmatpush1.bf16.msra.mxu0 0
    %118 = vmatprep.subr.bf16.mxu0 0
    %119 = vmatpush1.bf16.msra.mxu0 0
    %120 = vmatprep.subr.bf16.mxu0 0
    %121 = vmatpush1.bf16.msra.mxu0 0
    %122 = vmatprep.subr.bf16.mxu0 0
    %123 = vmatpush1.bf16.msra.mxu0 0
    %124 = vmatprep.subr.bf16.mxu0 0
    %125 = vmatpush1.bf16.msra.mxu0 %v105
    %126 = vmatprep.subr.bf16.mxu0 0
    %127 = vmatpush1.bf16.msra.mxu0 %v104
    %128 = vmatprep.subr.bf16.mxu0 0
    %129 = vmatpush2.bf16.msra.mxu0 0
    %130 = vmatprep.subr.bf16.mxu0 0
    %131 = vmatpush2.bf16.msra.mxu0 0
    %132 = vmatprep.subr.bf16.mxu0 0
    %133 = vmatpush2.bf16.msra.mxu0 0
    %134 = vmatprep.subr.bf16.mxu0 0
    %135 = vmatpush2.bf16.msra.mxu0 0
    %136 = vmatprep.subr.bf16.mxu0 0
    %137 = vmatpush2.bf16.msra.mxu0 0
    %138 = vmatprep.subr.bf16.mxu0 0
    %139 = vmatpush2.bf16.msra.mxu0 0
    %140 = vmatprep.subr.bf16.mxu0 0
    %141 = vmatpush2.bf16.msra.mxu0 0
    %142 = vmatprep.subr.bf16.mxu0 0
    %143 = vmatpush2.bf16.msra.mxu0 0
    %144 = vmatprep.mubr.bf16.mxu0 0
    %145 = vmatmul.mubr.bf16.gmra.mxu0 %v110
    %v146 = vpop.f32.mrf.mxu0
    %v147 = vadd.f32 %v90, %v146
    %v148 = vpop.f32.mrf.mxu0
    %v149 = vpop.f32.mrf.mxu0
    %v150 = vadd.f32 %v90, %v149
    %v151 = vpop.f32.mrf.mxu0
    %152 = vdwg.mxu0
    %v153 = vmul.f32 %v147, 0.01
    %v154 = vmul.f32 %v150, 0.01
    %v155 = vmax.f32 %v147, %v153
    %v156 = vmax.f32 %v150, %v154
    %v157 = vpack.c.bf16 %v156, %v155
    %v158 = vld [vmem:[#allocation7] sm:$0xf]
    %v159 = vld [vmem:[#allocation7 + $0x4] sm:$0xf]
    %v160 = vld [vmem:[#allocation7 + $0x8] sm:$0xf]
    %v161 = vld [vmem:[#allocation7 + $0xc] sm:$0xf]
    %v162 = vld [vmem:[%s3 + $0x1] sm:$0x1]
    %v163 = vlaneseq
    %v164 = vshrl.u32 %v163, 7
    %v165 = vsub.s32 0, %v164
    %v166 = vrot.slane %v162, %v165
    %v171 = vunpack.c.l.b16 %v158
    %v172 = vunpack.c.l.b16 %v159
    %v173 = vunpack.c.l.b16 %v160
    %v174 = vunpack.c.l.b16 %v161
    %v175 = vpack.c.b16 %v172, %v171
    %v176 = vpack.c.b16 %v174, %v173
    %v180 = vsel %vm108, %v157, 0
    %182 = vmatprep.subr.bf16.mxu0 0
    %183 = vmatpush1.bf16.msra.mxu0 0
    %184 = vmatprep.subr.bf16.mxu0 0
    %185 = vmatpush1.bf16.msra.mxu0 0
    %186 = vmatprep.subr.bf16.mxu0 0
    %187 = vmatpush1.bf16.msra.mxu0 0
    %188 = vmatprep.subr.bf16.mxu0 0
    %189 = vmatpush1.bf16.msra.mxu0 0
    %190 = vmatprep.subr.bf16.mxu0 0
    %191 = vmatpush1.bf16.msra.mxu0 0
    %192 = vmatprep.subr.bf16.mxu0 0
    %193 = vmatpush1.bf16.msra.mxu0 0
    %194 = vmatprep.subr.bf16.mxu0 0
    %195 = vmatpush1.bf16.msra.mxu0 %v176
    %196 = vmatprep.subr.bf16.mxu0 0
    %197 = vmatpush1.bf16.msra.mxu0 %v175
    %198 = vmatprep.subr.bf16.mxu0 0
    %199 = vmatpush2.bf16.msra.mxu0 0
    %200 = vmatprep.subr.bf16.mxu0 0
    %201 = vmatpush2.bf16.msra.mxu0 0
    %202 = vmatprep.subr.bf16.mxu0 0
    %203 = vmatpush2.bf16.msra.mxu0 0
    %204 = vmatprep.subr.bf16.mxu0 0
    %205 = vmatpush2.bf16.msra.mxu0 0
    %206 = vmatprep.subr.bf16.mxu0 0
    %207 = vmatpush2.bf16.msra.mxu0 0
    %208 = vmatprep.subr.bf16.mxu0 0
    %209 = vmatpush2.bf16.msra.mxu0 0
    %210 = vmatprep.subr.bf16.mxu0 0
    %211 = vmatpush2.bf16.msra.mxu0 0
    %212 = vmatprep.subr.bf16.mxu0 0
    %213 = vmatpush2.bf16.msra.mxu0 0
    %214 = vmatprep.mubr.bf16.mxu0 0
    %215 = vmatmul.mubr.bf16.gmra.mxu0 %v180
    %v216 = vpop.f32.mrf.mxu0
    %v217 = vadd.f32 %v166, %v216
    %v218 = vpop.f32.mrf.mxu0
    %v219 = vpop.f32.mrf.mxu0
    %v220 = vadd.f32 %v166, %v219
    %v221 = vpop.f32.mrf.mxu0
    %222 = vdwg.mxu0
    %v223 = vmul.f32 %v217, 0.01
    %v224 = vmul.f32 %v220, 0.01
    %v225 = vmax.f32 %v217, %v223
    %v226 = vmax.f32 %v220, %v224
    %v227 = vpack.c.bf16 %v226, %v225
    %s228 = scalar_lea.vmem [#allocation7], 16
    %v229 = vld [vmem:[%s228] sm:$0xf]
    %v230 = vld [vmem:[%s228 + $0x4] sm:$0xf]
    %v231 = vld [vmem:[%s228 + $0x8] sm:$0xf]
    %v232 = vld [vmem:[%s228 + $0xc] sm:$0xf]
    %v233 = vld [vmem:[%s3 + $0x2] sm:$0x1]
    %v234 = vlaneseq
    %v235 = vshrl.u32 %v234, 7
    %v236 = vsub.s32 0, %v235
    %v237 = vrot.slane %v233, %v236
    %v242 = vunpack.c.l.b16 %v229
    %v243 = vunpack.c.l.b16 %v230
    %v244 = vunpack.c.l.b16 %v231
    %v245 = vunpack.c.l.b16 %v232
    %v246 = vpack.c.b16 %v243, %v242
    %v247 = vpack.c.b16 %v245, %v244
    %v251 = vsel %vm108, %v227, 0
    %253 = vmatprep.subr.bf16.mxu0 0
    %254 = vmatpush1.bf16.msra.mxu0 0
    %255 = vmatprep.subr.bf16.mxu0 0
    %256 = vmatpush1.bf16.msra.mxu0 0
    %257 = vmatprep.subr.bf16.mxu0 0
    %258 = vmatpush1.bf16.msra.mxu0 0
    %259 = vmatprep.subr.bf16.mxu0 0
    %260 = vmatpush1.bf16.msra.mxu0 0
    %261 = vmatprep.subr.bf16.mxu0 0
    %262 = vmatpush1.bf16.msra.mxu0 0
    %263 = vmatprep.subr.bf16.mxu0 0
    %264 = vmatpush1.bf16.msra.mxu0 0
    %265 = vmatprep.subr.bf16.mxu0 0
    %266 = vmatpush1.bf16.msra.mxu0 %v247
    %267 = vmatprep.subr.bf16.mxu0 0
    %268 = vmatpush1.bf16.msra.mxu0 %v246
    %269 = vmatprep.subr.bf16.mxu0 0
    %270 = vmatpush2.bf16.msra.mxu0 0
    %271 = vmatprep.subr.bf16.mxu0 0
    %272 = vmatpush2.bf16.msra.mxu0 0
    %273 = vmatprep.subr.bf16.mxu0 0
    %274 = vmatpush2.bf16.msra.mxu0 0
    %275 = vmatprep.subr.bf16.mxu0 0
    %276 = vmatpush2.bf16.msra.mxu0 0
    %277 = vmatprep.subr.bf16.mxu0 0
    %278 = vmatpush2.bf16.msra.mxu0 0
    %279 = vmatprep.subr.bf16.mxu0 0
    %280 = vmatpush2.bf16.msra.mxu0 0
    %281 = vmatprep.subr.bf16.mxu0 0
    %282 = vmatpush2.bf16.msra.mxu0 0
    %283 = vmatprep.subr.bf16.mxu0 0
    %284 = vmatpush2.bf16.msra.mxu0 0
    %285 = vmatprep.mubr.bf16.mxu0 0
    %286 = vmatmul.mubr.bf16.gmra.mxu0 %v251
    %v287 = vpop.f32.mrf.mxu0
    %v288 = vadd.f32 %v237, %v287
    %v289 = vpop.f32.mrf.mxu0
    %v290 = vpop.f32.mrf.mxu0
    %v291 = vadd.f32 %v237, %v290
    %v292 = vpop.f32.mrf.mxu0
    %293 = vdwg.mxu0
    %v294 = vmul.f32 %v288, 0.01
    %v295 = vmul.f32 %v291, 0.01
    %v296 = vmax.f32 %v288, %v294
    %v297 = vmax.f32 %v291, %v295
    %v298 = vpack.c.bf16 %v297, %v296
    %v299 = vld [vmem:[#allocation8] sm:$0xf]
    %v300 = vld [vmem:[#allocation8 + $0x4] sm:$0xf]
    %v301 = vld [vmem:[#allocation8 + $0x8] sm:$0xf]
    %v302 = vld [vmem:[#allocation8 + $0xc] sm:$0xf]
    %v303 = vld [vmem:[%s5] sm:$0x1]
    %v305 = vlaneseq
    %v306 = vshrl.u32 %v305, 7
    %v307 = vsub.s32 0, %v306
    %v308 = vrot.slane %v303, %v307
    %v314 = vunpack.c.l.b16 %v299
    %v315 = vunpack.c.l.b16 %v300
    %v316 = vunpack.c.l.b16 %v301
    %v317 = vunpack.c.l.b16 %v302
    %v318 = vpack.c.b16 %v315, %v314
    %v319 = vpack.c.b16 %v317, %v316
    %v323 = vsel %vm108, %v298, 0
    %325 = vmatprep.subr.bf16.mxu0 0
    %326 = vmatpush1.bf16.msra.mxu0 0
    %327 = vmatprep.subr.bf16.mxu0 0
    %328 = vmatpush1.bf16.msra.mxu0 0
    %329 = vmatprep.subr.bf16.mxu0 0
    %330 = vmatpush1.bf16.msra.mxu0 0
    %331 = vmatprep.subr.bf16.mxu0 0
    %332 = vmatpush1.bf16.msra.mxu0 0
    %333 = vmatprep.subr.bf16.mxu0 0
    %334 = vmatpush1.bf16.msra.mxu0 0
    %335 = vmatprep.subr.bf16.mxu0 0
    %336 = vmatpush1.bf16.msra.mxu0 0
    %337 = vmatprep.subr.bf16.mxu0 0
    %338 = vmatpush1.bf16.msra.mxu0 %v319
    %339 = vmatprep.subr.bf16.mxu0 0
    %340 = vmatpush1.bf16.msra.mxu0 %v318
    %341 = vmatprep.subr.bf16.mxu0 0
    %342 = vmatpush2.bf16.msra.mxu0 0
    %343 = vmatprep.subr.bf16.mxu0 0
    %344 = vmatpush2.bf16.msra.mxu0 0
    %345 = vmatprep.subr.bf16.mxu0 0
    %346 = vmatpush2.bf16.msra.mxu0 0
    %347 = vmatprep.subr.bf16.mxu0 0
    %348 = vmatpush2.bf16.msra.mxu0 0
    %349 = vmatprep.subr.bf16.mxu0 0
    %350 = vmatpush2.bf16.msra.mxu0 0
    %351 = vmatprep.subr.bf16.mxu0 0
    %352 = vmatpush2.bf16.msra.mxu0 0
    %353 = vmatprep.subr.bf16.mxu0 0
    %354 = vmatpush2.bf16.msra.mxu0 0
    %355 = vmatprep.subr.bf16.mxu0 0
    %356 = vmatpush2.bf16.msra.mxu0 0
    %357 = vmatprep.mubr.bf16.mxu0 0
    %358 = vmatmul.mubr.bf16.gmra.mxu0 %v323
    %v359 = vpop.f32.mrf.mxu0
    %v360 = vadd.f32 %v308, %v359
    %v361 = vpop.f32.mrf.mxu0
    %v362 = vpop.f32.mrf.mxu0
    %v363 = vadd.f32 %v308, %v362
    %v364 = vpop.f32.mrf.mxu0
    %365 = vdwg.mxu0
    %366 = vst [vmem:[#allocation10] sm:$0xff] %v360
    %367 = vst [vmem:[#allocation10 + $0x8] sm:$0xff] %v363
    // Predicated region
    $region42: #{tpu_custom_call.1} parent=1 // pred_check
      _
    $region43: #{tpu_custom_call.1} parent=1 // pred_check_branch
      %369 = sbr.rel (0) target = $region45
    $region44: #{tpu_custom_call.1} parent=1 // pred_region
      %s371 = ssub.s32 256, 256
      %372 = vsyncadd [#allocation4], %s371
      %s373 = sshll.u32 [#allocation10], 4
      %s374 = int_to_ptr.vmem [resolvable:$true] %s373
      %379 = dma.vmem_to_hbm [thread:$0]  %s374, 256, %s6, [#allocation4], 128, 128, 8
    $region45: #{tpu_custom_call.1} parent=1 // pred_fallthru
      _
    // Predicated region
    $region46: #{tpu_custom_call.1} parent=1 // pred_check
      _
    $region47: #{tpu_custom_call.1} parent=1 // pred_check_branch
      %381 = sbr.rel (0) target = $region49
    $region48: #{tpu_custom_call.1} parent=1 // pred_region
      %382 = dma.done [#allocation4], 256
    $region49: #{tpu_custom_call.1} parent=1 // pred_fallthru
      _
    %383 = vsyncpa [#allocation3], 1
    %384 = vsyncpa [#allocation6], 1
    %385 = vsyncpa [#allocation9], 1
    %386 = vsyncpa [#allocation4], 1

// kernel: tpu_custom_call.1
$region0: #{tpu_custom_call.1}
  #allocation0 [shape = 'u32[]', space=smem, size = 0x4, offset = 0x4, fixed_abs, tag = 'smem constant byte address 0x4 - core index']
  #allocation1 [shape = 'u32[144,128]{1,0:T(1,128)}', space=vmem, size = 0x12000, scoped, tag = 'internal scratch']
  %s0 = inlined_call_operand.hbm [shape: bf16[16,32], index: 0, kind: input, shape index: {}]
  %s1 = inlined_call_operand.hbm [shape: bf16[32,32], index: 1, kind: input, shape index: {}]
  %s2 = inlined_call_operand.hbm [shape: bf16[2,32,32], index: 2, kind: input, shape index: {}]
  %s3 = inlined_call_operand.vmem [shape: f32[3,32], index: 3, kind: input, shape index: {}]
  %s4 = inlined_call_operand.hbm [shape: bf16[32,128], index: 4, kind: input, shape index: {}]
  %s5 = inlined_call_operand.vmem [shape: f32[1,128], index: 5, kind: input, shape index: {}]
  %s6 = inlined_call_operand.hbm [shape: f32[16,128], index: 6, kind: output, shape index: {}]
  %s7 = sld [smem:[#allocation0]]
  $region50: #{tpu_custom_call.1} parent=0
    _
  %s9 = ssub.s32 1, %s7
  %s10 = scalar_select 0, %s9, %s7
  $region1: #{tpu_custom_call.1} parent=0
    #allocation2 [shape = 'u8[4096]{0}', space=vmem, size = 0x1000, scoped, tag = 'input window, operand 0, single buffered']
    #allocation3 [shape = 's32[1]{0}', space=sflag, size = 0x4, scoped, tag = 'scoped memory for tpu_custom_call.1']
    #allocation4 [shape = 's32[1]{0}', space=sflag, size = 0x4, scoped, tag = 'scoped memory for tpu_custom_call.1']
    #allocation5 [shape = 'u8[8192]{0}', space=vmem, size = 0x2000, scoped, tag = 'input window, operand 1, single buffered']
    #allocation6 [shape = 's32[1]{0}', space=sflag, size = 0x4, scoped, tag = 'scoped memory for tpu_custom_call.1']
    #allocation7 [shape = 'u8[16384]{0}', space=vmem, size = 0x4000, scoped, tag = 'input window, operand 2, single buffered']
    #allocation8 [shape = 'u8[8192]{0}', space=vmem, size = 0x2000, scoped, tag = 'input window, operand 4, single buffered']
    #allocation9 [shape = 's32[1]{0}', space=sflag, size = 0x4, scoped, tag = 'scoped memory for tpu_custom_call.1']
    #allocation10 [shape = 'u8[8192]{0}', space=vmem, size = 0x2000, scoped, tag = 'output window, operand 0, single buffered']
    %11 = vsyncpa [#allocation3], 0
    %12 = vsyncpa [#allocation6], 0
    %13 = vsyncpa [#allocation9], 0
    %14 = vsyncpa [#allocation4], 0
    // Predicated region
    $region2: #{tpu_custom_call.1} parent=1 // pred_check
      _
    $region3: #{tpu_custom_call.1} parent=1 // pred_check_branch
      %16 = sbr.rel (0) target = $region5
    $region4: #{tpu_custom_call.1} parent=1 // pred_region
      %s18 = ssub.s32 128, 128
      %19 = vsyncadd [#allocation3], %s18
      %s20 = sshll.u32 [#allocation2], 4
      %s21 = int_to_ptr.vmem [resolvable:$true] %s20
      %26 = dma.hbm_to_vmem [thread:$0]  %s0, 128, %s21, [#allocation3], 64, 64, 4
    $region5: #{tpu_custom_call.1} parent=1 // pred_fallthru
      _
    // Predicated region
    $region6: #{tpu_custom_call.1} parent=1 // pred_check
      _
    $region7: #{tpu_custom_call.1} parent=1 // pred_check_branch
      %28 = sbr.rel (0) target = $region9
    $region8: #{tpu_custom_call.1} parent=1 // pred_region
      %s30 = ssub.s32 256, 256
      %31 = vsyncadd [#allocation6], %s30
      %s32 = sshll.u32 [#allocation5], 4
      %s33 = int_to_ptr.vmem [resolvable:$true] %s32
      %38 = dma.hbm_to_vmem [thread:$0]  %s1, 256, %s33, [#allocation6], 64, 64, 4
    $region9: #{tpu_custom_call.1} parent=1 // pred_fallthru
      _
    // Predicated region
    $region10: #{tpu_custom_call.1} parent=1 // pred_check
      _
    $region11: #{tpu_custom_call.1} parent=1 // pred_check_branch
      %40 = sbr.rel (0) target = $region13
    $region12: #{tpu_custom_call.1} parent=1 // pred_region
      %s42 = ssub.s32 512, 512
      %43 = vsyncadd [#allocation6], %s42
      %s44 = sshll.u32 [#allocation7], 4
      %s45 = int_to_ptr.vmem [resolvable:$true] %s44
      %50 = dma.hbm_to_vmem [thread:$0]  %s2, 512, %s45, [#allocation6], 64, 64, 4
    $region13: #{tpu_custom_call.1} parent=1 // pred_fallthru
      _
    // Predicated region
    $region14: #{tpu_custom_call.1} parent=1 // pred_check
      _
    $region15: #{tpu_custom_call.1} parent=1 // pred_check_branch
      %52 = sbr.rel (0) target = $region17
    $region16: #{tpu_custom_call.1} parent=1 // pred_region
      _
    $region17: #{tpu_custom_call.1} parent=1 // pred_fallthru
      _
    // Predicated region
    $region18: #{tpu_custom_call.1} parent=1 // pred_check
      _
    $region19: #{tpu_custom_call.1} parent=1 // pred_check_branch
      %54 = sbr.rel (0) target = $region21
    $region20: #{tpu_custom_call.1} parent=1 // pred_region
      %s56 = ssub.s32 256, 256
      %57 = vsyncadd [#allocation9], %s56
      %s58 = sshll.u32 [#allocation8], 4
      %s59 = int_to_ptr.vmem [resolvable:$true] %s58
      %64 = dma.hbm_to_vmem [thread:$0]  %s4, 256, %s59, [#allocation9], 64, 64, 4
    $region21: #{tpu_custom_call.1} parent=1 // pred_fallthru
      _
    // Predicated region
    $region22: #{tpu_custom_call.1} parent=1 // pred_check
      _
    $region23: #{tpu_custom_call.1} parent=1 // pred_check_branch
      %66 = sbr.rel (0) target = $region25
    $region24: #{tpu_custom_call.1} parent=1 // pred_region
      _
    $region25: #{tpu_custom_call.1} parent=1 // pred_fallthru
      _
    // Predicated region
    $region26: #{tpu_custom_call.1} parent=1 // pred_check
      _
    $region27: #{tpu_custom_call.1} parent=1 // pred_check_branch
      %68 = sbr.rel (0) target = $region29
    $region28: #{tpu_custom_call.1} parent=1 // pred_region
      %69 = dma.done [#allocation3], 128
    $region29: #{tpu_custom_call.1} parent=1 // pred_fallthru
      _
    // Predicated region
    $region30: #{tpu_custom_call.1} parent=1 // pred_check
      _
    $region31: #{tpu_custom_call.1} parent=1 // pred_check_branch
      %71 = sbr.rel (0) target = $region33
    $region32: #{tpu_custom_call.1} parent=1 // pred_region
      %72 = dma.done [#allocation6], 256
    $region33: #{tpu_custom_call.1} parent=1 // pred_fallthru
      _
    // Predicated region
    $region34: #{tpu_custom_call.1} parent=1 // pred_check
      _
    $region35: #{tpu_custom_call.1} parent=1 // pred_check_branch
      %74 = sbr.rel (0) target = $region37
    $region36: #{tpu_custom_call.1} parent=1 // pred_region
      %75 = dma.done [#allocation6], 512
    $region37: #{tpu_custom_call.1} parent=1 // pred_fallthru
      _
    // Predicated region
    $region38: #{tpu_custom_call.1} parent=1 // pred_check
      _
    $region39: #{tpu_custom_call.1} parent=1 // pred_check_branch
      %77 = sbr.rel (0) target = $region41
    $region40: #{tpu_custom_call.1} parent=1 // pred_region
      %78 = dma.done [#allocation9], 256
    $region41: #{tpu_custom_call.1} parent=1 // pred_fallthru
      _
    %v80 = vld [vmem:[#allocation2] sm:$0xf]
    %v81 = vld [vmem:[#allocation2 + $0x4] sm:$0xf]
    %v82 = vld [vmem:[#allocation5] sm:$0xf]
    %v83 = vld [vmem:[#allocation5 + $0x4] sm:$0xf]
    %v84 = vld [vmem:[#allocation5 + $0x8] sm:$0xf]
    %v85 = vld [vmem:[#allocation5 + $0xc] sm:$0xf]
    %v86 = vld [vmem:[%s3] sm:$0x1]
    %v87 = vlaneseq
    %v88 = vshrl.u32 %v87, 7
    %v89 = vsub.s32 0, %v88
    %v90 = vrot.slane %v86, %v89
    %v93 = vunpack.c.l.b16 %v80
    %v94 = vunpack.c.l.b16 %v81
    %v95 = vpack.c.b16 %v94, %v93
    %v100 = vunpack.c.l.b16 %v82
    %v101 = vunpack.c.l.b16 %v83
    %v102 = vunpack.c.l.b16 %v84
    %v103 = vunpack.c.l.b16 %v85
    %v104 = vpack.c.b16 %v101, %v100
    %v105 = vpack.c.b16 %v103, %v102
    %vm108 = vcmask 261120
    %v110 = vsel %vm108, %v95, 0
    %112 = vmatprep.subr.bf16.mxu0 0
    %113 = vmatpush1.bf16.msra.mxu0 0
    %114 = vmatprep.subr.bf16.mxu0 0
    %115 = vmatpush1.bf16.msra.mxu0 0
    %116 = vmatprep.subr.bf16.mxu0 0
    %117 = vmatpush1.bf16.msra.mxu0 0
    %118 = vmatprep.subr.bf16.mxu0 0
    %119 = vmatpush1.bf16.msra.mxu0 0
    %120 = vmatprep.subr.bf16.mxu0 0
    %121 = vmatpush1.bf16.msra.mxu0 0
    %122 = vmatprep.subr.bf16.mxu0 0
    %123 = vmatpush1.bf16.msra.mxu0 0
    %124 = vmatprep.subr.bf16.mxu0 0
    %125 = vmatpush1.bf16.msra.mxu0 %v105
    %126 = vmatprep.subr.bf16.mxu0 0
    %127 = vmatpush1.bf16.msra.mxu0 %v104
    %128 = vmatprep.subr.bf16.mxu0 0
    %129 = vmatpush2.bf16.msra.mxu0 0
    %130 = vmatprep.subr.bf16.mxu0 0
    %131 = vmatpush2.bf16.msra.mxu0 0
    %132 = vmatprep.subr.bf16.mxu0 0
    %133 = vmatpush2.bf16.msra.mxu0 0
    %134 = vmatprep.subr.bf16.mxu0 0
    %135 = vmatpush2.bf16.msra.mxu0 0
    %136 = vmatprep.subr.bf16.mxu0 0
    %137 = vmatpush2.bf16.msra.mxu0 0
    %138 = vmatprep.subr.bf16.mxu0 0
    %139 = vmatpush2.bf16.msra.mxu0 0
    %140 = vmatprep.subr.bf16.mxu0 0
    %141 = vmatpush2.bf16.msra.mxu0 0
    %142 = vmatprep.subr.bf16.mxu0 0
    %143 = vmatpush2.bf16.msra.mxu0 0
    %144 = vmatprep.mubr.bf16.mxu0 0
    %145 = vmatmul.mubr.bf16.gmra.mxu0 %v110
    %v146 = vpop.f32.mrf.mxu0
    %v147 = vadd.f32 %v90, %v146
    %v148 = vpop.f32.mrf.mxu0
    %v149 = vpop.f32.mrf.mxu0
    %v150 = vadd.f32 %v90, %v149
    %v151 = vpop.f32.mrf.mxu0
    %152 = vdwg.mxu0
    %v153 = vmul.f32 %v147, 0.01
    %v154 = vmul.f32 %v150, 0.01
    %v155 = vmax.f32 %v147, %v153
    %v156 = vmax.f32 %v150, %v154
    %v157 = vpack.c.bf16 %v156, %v155
    %v158 = vld [vmem:[#allocation7] sm:$0xf]
    %v159 = vld [vmem:[#allocation7 + $0x4] sm:$0xf]
    %v160 = vld [vmem:[#allocation7 + $0x8] sm:$0xf]
    %v161 = vld [vmem:[#allocation7 + $0xc] sm:$0xf]
    %v162 = vld [vmem:[%s3 + $0x1] sm:$0x1]
    %v163 = vlaneseq
    %v164 = vshrl.u32 %v163, 7
    %v165 = vsub.s32 0, %v164
    %v166 = vrot.slane %v162, %v165
    %v171 = vunpack.c.l.b16 %v158
    %v172 = vunpack.c.l.b16 %v159
    %v173 = vunpack.c.l.b16 %v160
    %v174 = vunpack.c.l.b16 %v161
    %v175 = vpack.c.b16 %v172, %v171
    %v176 = vpack.c.b16 %v174, %v173
    %v180 = vsel %vm108, %v157, 0
    %182 = vmatprep.subr.bf16.mxu0 0
    %183 = vmatpush1.bf16.msra.mxu0 0
    %184 = vmatprep.subr.bf16.mxu0 0
    %185 = vmatpush1.bf16.msra.mxu0 0
    %186 = vmatprep.subr.bf16.mxu0 0
    %187 = vmatpush1.bf16.msra.mxu0 0
    %188 = vmatprep.subr.bf16.mxu0 0
    %189 = vmatpush1.bf16.msra.mxu0 0
    %190 = vmatprep.subr.bf16.mxu0 0
    %191 = vmatpush1.bf16.msra.mxu0 0
    %192 = vmatprep.subr.bf16.mxu0 0
    %193 = vmatpush1.bf16.msra.mxu0 0
    %194 = vmatprep.subr.bf16.mxu0 0
    %195 = vmatpush1.bf16.msra.mxu0 %v176
    %196 = vmatprep.subr.bf16.mxu0 0
    %197 = vmatpush1.bf16.msra.mxu0 %v175
    %198 = vmatprep.subr.bf16.mxu0 0
    %199 = vmatpush2.bf16.msra.mxu0 0
    %200 = vmatprep.subr.bf16.mxu0 0
    %201 = vmatpush2.bf16.msra.mxu0 0
    %202 = vmatprep.subr.bf16.mxu0 0
    %203 = vmatpush2.bf16.msra.mxu0 0
    %204 = vmatprep.subr.bf16.mxu0 0
    %205 = vmatpush2.bf16.msra.mxu0 0
    %206 = vmatprep.subr.bf16.mxu0 0
    %207 = vmatpush2.bf16.msra.mxu0 0
    %208 = vmatprep.subr.bf16.mxu0 0
    %209 = vmatpush2.bf16.msra.mxu0 0
    %210 = vmatprep.subr.bf16.mxu0 0
    %211 = vmatpush2.bf16.msra.mxu0 0
    %212 = vmatprep.subr.bf16.mxu0 0
    %213 = vmatpush2.bf16.msra.mxu0 0
    %214 = vmatprep.mubr.bf16.mxu0 0
    %215 = vmatmul.mubr.bf16.gmra.mxu0 %v180
    %v216 = vpop.f32.mrf.mxu0
    %v217 = vadd.f32 %v166, %v216
    %v218 = vpop.f32.mrf.mxu0
    %v219 = vpop.f32.mrf.mxu0
    %v220 = vadd.f32 %v166, %v219
    %v221 = vpop.f32.mrf.mxu0
    %222 = vdwg.mxu0
    %v223 = vmul.f32 %v217, 0.01
    %v224 = vmul.f32 %v220, 0.01
    %v225 = vmax.f32 %v217, %v223
    %v226 = vmax.f32 %v220, %v224
    %v227 = vpack.c.bf16 %v226, %v225
    %s228 = scalar_lea.vmem [#allocation7], 16
    %v229 = vld [vmem:[%s228] sm:$0xf]
    %v230 = vld [vmem:[%s228 + $0x4] sm:$0xf]
    %v231 = vld [vmem:[%s228 + $0x8] sm:$0xf]
    %v232 = vld [vmem:[%s228 + $0xc] sm:$0xf]
    %v233 = vld [vmem:[%s3 + $0x2] sm:$0x1]
    %v234 = vlaneseq
    %v235 = vshrl.u32 %v234, 7
    %v236 = vsub.s32 0, %v235
    %v237 = vrot.slane %v233, %v236
    %v242 = vunpack.c.l.b16 %v229
    %v243 = vunpack.c.l.b16 %v230
    %v244 = vunpack.c.l.b16 %v231
    %v245 = vunpack.c.l.b16 %v232
    %v246 = vpack.c.b16 %v243, %v242
    %v247 = vpack.c.b16 %v245, %v244
    %v251 = vsel %vm108, %v227, 0
    %253 = vmatprep.subr.bf16.mxu0 0
    %254 = vmatpush1.bf16.msra.mxu0 0
    %255 = vmatprep.subr.bf16.mxu0 0
    %256 = vmatpush1.bf16.msra.mxu0 0
    %257 = vmatprep.subr.bf16.mxu0 0
    %258 = vmatpush1.bf16.msra.mxu0 0
    %259 = vmatprep.subr.bf16.mxu0 0
    %260 = vmatpush1.bf16.msra.mxu0 0
    %261 = vmatprep.subr.bf16.mxu0 0
    %262 = vmatpush1.bf16.msra.mxu0 0
    %263 = vmatprep.subr.bf16.mxu0 0
    %264 = vmatpush1.bf16.msra.mxu0 0
    %265 = vmatprep.subr.bf16.mxu0 0
    %266 = vmatpush1.bf16.msra.mxu0 %v247
    %267 = vmatprep.subr.bf16.mxu0 0
    %268 = vmatpush1.bf16.msra.mxu0 %v246
    %269 = vmatprep.subr.bf16.mxu0 0
    %270 = vmatpush2.bf16.msra.mxu0 0
    %271 = vmatprep.subr.bf16.mxu0 0
    %272 = vmatpush2.bf16.msra.mxu0 0
    %273 = vmatprep.subr.bf16.mxu0 0
    %274 = vmatpush2.bf16.msra.mxu0 0
    %275 = vmatprep.subr.bf16.mxu0 0
    %276 = vmatpush2.bf16.msra.mxu0 0
    %277 = vmatprep.subr.bf16.mxu0 0
    %278 = vmatpush2.bf16.msra.mxu0 0
    %279 = vmatprep.subr.bf16.mxu0 0
    %280 = vmatpush2.bf16.msra.mxu0 0
    %281 = vmatprep.subr.bf16.mxu0 0
    %282 = vmatpush2.bf16.msra.mxu0 0
    %283 = vmatprep.subr.bf16.mxu0 0
    %284 = vmatpush2.bf16.msra.mxu0 0
    %285 = vmatprep.mubr.bf16.mxu0 0
    %286 = vmatmul.mubr.bf16.gmra.mxu0 %v251
    %v287 = vpop.f32.mrf.mxu0
    %v288 = vadd.f32 %v237, %v287
    %v289 = vpop.f32.mrf.mxu0
    %v290 = vpop.f32.mrf.mxu0
    %v291 = vadd.f32 %v237, %v290
    %v292 = vpop.f32.mrf.mxu0
    %293 = vdwg.mxu0
    %v294 = vmul.f32 %v288, 0.01
    %v295 = vmul.f32 %v291, 0.01
    %v296 = vmax.f32 %v288, %v294
    %v297 = vmax.f32 %v291, %v295
    %v298 = vpack.c.bf16 %v297, %v296
    %v299 = vld [vmem:[#allocation8] sm:$0xf]
    %v300 = vld [vmem:[#allocation8 + $0x4] sm:$0xf]
    %v301 = vld [vmem:[#allocation8 + $0x8] sm:$0xf]
    %v302 = vld [vmem:[#allocation8 + $0xc] sm:$0xf]
    %v303 = vld [vmem:[%s5] sm:$0x1]
    %v305 = vlaneseq
    %v306 = vshrl.u32 %v305, 7
    %v307 = vsub.s32 0, %v306
    %v308 = vrot.slane %v303, %v307
    %v314 = vunpack.c.l.b16 %v299
    %v315 = vunpack.c.l.b16 %v300
    %v316 = vunpack.c.l.b16 %v301
    %v317 = vunpack.c.l.b16 %v302
    %v318 = vpack.c.b16 %v315, %v314
    %v319 = vpack.c.b16 %v317, %v316
    %v323 = vsel %vm108, %v298, 0
    %325 = vmatprep.subr.bf16.mxu0 0
    %326 = vmatpush1.bf16.msra.mxu0 0
    %327 = vmatprep.subr.bf16.mxu0 0
    %328 = vmatpush1.bf16.msra.mxu0 0
    %329 = vmatprep.subr.bf16.mxu0 0
    %330 = vmatpush1.bf16.msra.mxu0 0
    %331 = vmatprep.subr.bf16.mxu0 0
    %332 = vmatpush1.bf16.msra.mxu0 0
    %333 = vmatprep.subr.bf16.mxu0 0
    %334 = vmatpush1.bf16.msra.mxu0 0
    %335 = vmatprep.subr.bf16.mxu0 0
    %336 = vmatpush1.bf16.msra.mxu0 0
    %337 = vmatprep.subr.bf16.mxu0 0
    %338 = vmatpush1.bf16.msra.mxu0 %v319
    %339 = vmatprep.subr.bf16.mxu0 0
    %340 = vmatpush1.bf16.msra.mxu0 %v318
    %341 = vmatprep.subr.bf16.mxu0 0
    %342 = vmatpush2.bf16.msra.mxu0 0
    %343 = vmatprep.subr.bf16.mxu0 0
    %344 = vmatpush2.bf16.msra.mxu0 0
    %345 = vmatprep.subr.bf16.mxu0 0
    %346 = vmatpush2.bf16.msra.mxu0 0
    %347 = vmatprep.subr.bf16.mxu0 0
    %348 = vmatpush2.bf16.msra.mxu0 0
    %349 = vmatprep.subr.bf16.mxu0 0
    %350 = vmatpush2.bf16.msra.mxu0 0
    %351 = vmatprep.subr.bf16.mxu0 0
    %352 = vmatpush2.bf16.msra.mxu0 0
    %353 = vmatprep.subr.bf16.mxu0 0
    %354 = vmatpush2.bf16.msra.mxu0 0
    %355 = vmatprep.subr.bf16.mxu0 0
    %356 = vmatpush2.bf16.msra.mxu0 0
    %357 = vmatprep.mubr.bf16.mxu0 0
    %358 = vmatmul.mubr.bf16.gmra.mxu0 %v323
    %v359 = vpop.f32.mrf.mxu0
    %v360 = vadd.f32 %v308, %v359
    %v361 = vpop.f32.mrf.mxu0
    %v362 = vpop.f32.mrf.mxu0
    %v363 = vadd.f32 %v308, %v362
    %v364 = vpop.f32.mrf.mxu0
    %365 = vdwg.mxu0
    %366 = vst [vmem:[#allocation10] sm:$0xff] %v360
    %367 = vst [vmem:[#allocation10 + $0x8] sm:$0xff] %v363
    // Predicated region
    $region42: #{tpu_custom_call.1} parent=1 // pred_check
      _
    $region43: #{tpu_custom_call.1} parent=1 // pred_check_branch
      %369 = sbr.rel (0) target = $region45
    $region44: #{tpu_custom_call.1} parent=1 // pred_region
      %s371 = ssub.s32 256, 256
      %372 = vsyncadd [#allocation4], %s371
      %s373 = sshll.u32 [#allocation10], 4
      %s374 = int_to_ptr.vmem [resolvable:$true] %s373
      %379 = dma.vmem_to_hbm [thread:$0]  %s374, 256, %s6, [#allocation4], 128, 128, 8
    $region45: #{tpu_custom_call.1} parent=1 // pred_fallthru
      _
    // Predicated region
    $region46: #{tpu_custom_call.1} parent=1 // pred_check
      _
    $region47: #{tpu_custom_call.1} parent=1 // pred_check_branch
      %381 = sbr.rel (0) target = $region49
    $region48: #{tpu_custom_call.1} parent=1 // pred_region
      %382 = dma.done [#allocation4], 256
    $region49: #{tpu_custom_call.1} parent=1 // pred_fallthru
      _
    %383 = vsyncpa [#allocation3], 1
    %384 = vsyncpa [#allocation6], 1
    %385 = vsyncpa [#allocation9], 1
    %386 = vsyncpa [#allocation4], 1

</llo_original>
